<compile_context>
chip_gen: v6e
topology: v6e:2x2x1
jax: 0.10.0
libtpu: 0.0.40
codegen_flags: <defaults>
</compile_context>

<pallas_src>
import math
import jax
import jax.numpy as jnp
from jax.experimental import pallas as pl
from jax.experimental.pallas import tpu as pltpu


def _round_up(n, m):
    return ((n + m - 1) // m) * m


def _mlp_kernel(x_ref,
                w1_ref, b1_ref,
                w2_ref, b2_ref,
                w3_ref, b3_ref,
                w4_ref, b4_ref,
                o_ref):
    mm_dtype = w1_ref.dtype          # MXU input dtype (bf16 or f32)

    # x arrives straight from HBM in its original (f32) dtype; cast on the VPU
    # here instead of materializing a casted copy in the wrapper.
    x = x_ref[...].astype(mm_dtype)

    # fc1 (+ folded bn1) -> relu   [f32 accumulation / elementwise]
    h1 = jnp.dot(x, w1_ref[...], preferred_element_type=jnp.float32) + b1_ref[...]
    h1 = jnp.maximum(h1, 0.0)
    # dropout(p=0.3): identity in eval mode

    # fc2 (+ folded bn2) -> relu
    h2 = jnp.dot(h1.astype(mm_dtype), w2_ref[...],
                 preferred_element_type=jnp.float32) + b2_ref[...]
    h2 = jnp.maximum(h2, 0.0)
    # dropout(p=0.3): identity in eval mode

    # fc3 -> relu
    h3 = jnp.dot(h2.astype(mm_dtype), w3_ref[...],
                 preferred_element_type=jnp.float32) + b3_ref[...]
    h3 = jnp.maximum(h3, 0.0)

    # fc4 (out_features = 1): VPU multiply + lane reduction instead of an N=1 MXU
    # matmul.  The (tile_b, 32) product is reshaped to (8, lanes, 32) (minor dim
    # untouched) and reduced on the last axis so the result lands directly in the
    # lane-dense (8, lanes) output layout -> dense stores, no 1-lane padded column.
    sub, lanes = o_ref.shape                              # (8, tile_b // 8)
    prod = h3 * w4_ref[...]                               # (tile_b, 32) f32
    o = jnp.sum(prod.reshape(sub, lanes, prod.shape[-1]), axis=-1)   # (8, lanes)
    o = o + b4_ref[...]                                   # (1, 1) broadcast
    o_ref[...] = o.astype(o_ref.dtype)


def enhanced_net_forward(x, params, *, tile_b=1024, matmul_dtype=jnp.bfloat16):
    """Fused eval-mode forward of EnhancedNet.

    x: (B, input_size) float32 (passed to the kernel uncast / unpadded).
    params: raw (PyTorch-like) parameters from init_params().
    tile_b: target batch tile per grid step (1024-4096 recommended).
    matmul_dtype: dtype of MXU inputs (bf16 recommended on all TPU generations).
    Returns (B, 1) float32.
    """
    B, F = x.shape
    eps = 1e-5

    # ---- Fold BatchNorm (running stats, affine) into the preceding linears ----
    s1 = params["gamma1"] / jnp.sqrt(params["var1"] + eps)
    t1 = params["beta1"] - params["mean1"] * s1
    s2 = params["gamma2"] / jnp.sqrt(params["var2"] + eps)
    t2 = params["beta2"] - params["mean2"] * s2

    w1 = (params["w1"] * s1).astype(matmul_dtype)          # (F, 128)
    b1 = (params["b1"] * s1 + t1).astype(jnp.float32)      # (1, 128)
    w2 = (params["w2"] * s2).astype(matmul_dtype)          # (128, 64)
    b2 = (params["b2"] * s2 + t2).astype(jnp.float32)      # (1, 64)
    w3 = params["w3"].astype(matmul_dtype)                 # (64, 32)
    b3 = params["b3"].astype(jnp.float32)                  # (1, 32)
    w4 = params["w4"].reshape(1, -1).astype(jnp.float32)   # (1, 32) row for reduce
    b4 = params["b4"].astype(jnp.float32)                  # (1, 1)

    # ---- Batch tiling (no wrapper-side padding of x) ----
    B8 = _round_up(B, 8)                  # sublane multiple for the block shape
    if B8 <= 256:
        tile_b_eff = B8                   # single small tile
    else:
        # >= 2 roughly balanced tiles (both v7x TensorCores via "parallel" axis),
        # 256-aligned for MXU M-fill, capped at the tuned tile size.
        tile_b_eff = min(int(tile_b), _round_up(pl.cdiv(B8, 2), 256))
    num_tiles = pl.cdiv(B, tile_b_eff)
    lanes = tile_b_eff // 8

    def rep(arr):                          # resident weight/bias: constant index_map
        nd = arr.ndim
        return pl.BlockSpec(arr.shape, lambda i, _nd=nd: (0,) * _nd)

    in_specs = [
        pl.BlockSpec((tile_b_eff, F), lambda i: (i, 0)),   # x batch tile (raw f32)
        rep(w1), rep(b1),
        rep(w2), rep(b2),
        rep(w3), rep(b3),
        rep(w4), rep(b4),
    ]
    # Lane-dense output: one dense (8, lanes) block per grid step.
    out_specs = pl.BlockSpec((8, lanes), lambda i: (i, 0))
    out_shape = jax.ShapeDtypeStruct((num_tiles * 8, lanes), jnp.float32)

    # Advisory cost estimate: tells XLA this is a cheap, bandwidth-dominated call.
    mm_bytes = jnp.dtype(matmul_dtype).itemsize
    flops = 2 * B * (F * 128 + 128 * 64 + 64 * 32 + 32)
    bytes_accessed = (B * F * 4                               # x read (f32)
                      + num_tiles * tile_b_eff * 4            # out write (f32)
                      + (F * 128 + 128 * 64 + 64 * 32) * mm_bytes
                      + (128 + 64 + 32 + 32 + 1) * 4)         # biases + w4
    cost = pl.CostEstimate(flops=flops, transcendentals=0,
                           bytes_accessed=bytes_accessed)

    cp_kwargs = dict(dimension_semantics=("parallel",))
    if tile_b_eff >= 2048:
        # v5e's default scoped-VMEM limit is 16 MiB; give explicit headroom once
        # the double-buffered x tile plus f32 h1/h2/h3 temporaries grow.
        cp_kwargs["vmem_limit_bytes"] = 48 << 20

    out = pl.pallas_call(
        _mlp_kernel,
        out_shape=out_shape,
        grid_spec=pltpu.PrefetchScalarGridSpec(
            num_scalar_prefetch=0,
            grid=(num_tiles,),
            in_specs=in_specs,
            out_specs=out_specs,
        ),
        compiler_params=pltpu.CompilerParams(**cp_kwargs),
        cost_estimate=cost,
    )(x, w1, b1, w2, b2, w3, b3, w4, b4)

    # (num_tiles*8, lanes) row-major is exactly (num_tiles*tile_b, 1); reshape and
    # slice off the (< tile_b) ragged rows of the last tile.
    return out.reshape(-1, 1)[:B]


def init_params(key, input_size):
    """Deterministic init mimicking PyTorch defaults:
    Linear: U(+-1/sqrt(fan_in)) for weight and bias (weights stored pre-transposed
    as (in, out)); BatchNorm uses randomized, non-trivial running stats and affine
    params so the BN-folding path is actually exercised."""
    dims = [(input_size, 128), (128, 64), (64, 32), (32, 1)]
    keys = jax.random.split(key, 2 * len(dims) + 8)
    params = {}
    for idx, (fan_in, fan_out) in enumerate(dims):
        bound = 1.0 / math.sqrt(fan_in)
        params[f"w{idx + 1}"] = jax.random.uniform(
            keys[2 * idx], (fan_in, fan_out),
            minval=-bound, maxval=bound, dtype=jnp.float32)
        params[f"b{idx + 1}"] = jax.random.uniform(
            keys[2 * idx + 1], (1, fan_out),
            minval=-bound, maxval=bound, dtype=jnp.float32)

    kb = keys[2 * len(dims):]
    for j, (idx, n) in enumerate([(1, 128), (2, 64)]):
        params[f"gamma{idx}"] = jax.random.uniform(
            kb[4 * j + 0], (1, n), minval=0.8, maxval=1.2, dtype=jnp.float32)
        params[f"beta{idx}"] = 0.1 * jax.random.normal(
            kb[4 * j + 1], (1, n), dtype=jnp.float32)
        params[f"mean{idx}"] = 0.1 * jax.random.normal(
            kb[4 * j + 2], (1, n), dtype=jnp.float32)
        params[f"var{idx}"] = jax.random.uniform(
            kb[4 * j + 3], (1, n), minval=0.5, maxval=1.5, dtype=jnp.float32)
    return params


def _reference_forward(x, p, eps=1e-5):
    """Plain-JAX f32 reference mirroring the PyTorch eval-mode forward."""
    def bn(h, idx):
        return ((h - p[f"mean{idx}"]) / jnp.sqrt(p[f"var{idx}"] + eps)
                * p[f"gamma{idx}"] + p[f"beta{idx}"])
    h = jnp.maximum(bn(x @ p["w1"] + p["b1"], 1), 0.0)
    h = jnp.maximum(bn(h @ p["w2"] + p["b2"], 2), 0.0)
    h = jnp.maximum(h @ p["w3"] + p["b3"], 0.0)
    return h @ p["w4"] + p["b4"]


if __name__ == "__main__":
    key = jax.random.PRNGKey(0)
    k_x, k_p, k_x2 = jax.random.split(key, 3)

    input_size = 16
    params = init_params(k_p, input_size)

    # ---- Small single-tile check (batch=8) ----
    batch = 8
    x = jax.random.normal(k_x, (batch, input_size), dtype=jnp.float32)
    ref = _reference_forward(x, params)

    # f32 MXU-input path: structural check (BN folding, lane-dense output mapping).
    # Tolerance allows for reduced-precision MXU passes on f32 inputs.
    out_f32 = jax.block_until_ready(
        enhanced_net_forward(x, params, matmul_dtype=jnp.float32))
    assert out_f32.shape == (batch, 1)
    assert jnp.allclose(out_f32, ref, atol=1e-2, rtol=1e-2)

    # Default bf16 MXU-input path (f32 accumulation): looser tolerance.
    out_bf16 = jax.block_until_ready(enhanced_net_forward(x, params))
    assert out_bf16.shape == (batch, 1)
    assert jnp.allclose(out_bf16, ref, atol=5e-2, rtol=5e-2)

    # ---- Ragged multi-tile check (B % tile_b != 0 -> partial last block,
    #      no wrapper-side padding, lane-dense output reassembly) ----
    batch2 = 1000
    x2 = jax.random.normal(k_x2, (batch2, input_size), dtype=jnp.float32)
    ref2 = _reference_forward(x2, params)
    out2 = jax.block_until_ready(
        enhanced_net_forward(x2, params, tile_b=256, matmul_dtype=jnp.float32))
    assert out2.shape == (batch2, 1)
    assert jnp.allclose(out2, ref2, atol=1e-2, rtol=1e-2)

    print("KERNEL_OK")
</pallas_src>

<mosaic_0001>
module attributes {stable_mosaic.version = 11 : i64} {
  func.func @_mlp_kernel(%arg0: i32, %arg1: memref<8x16xf32, #tpu.memory_space<vmem>>, %arg2: memref<16x128xf32, #tpu.memory_space<vmem>>, %arg3: memref<1x128xf32, #tpu.memory_space<vmem>>, %arg4: memref<128x64xf32, #tpu.memory_space<vmem>>, %arg5: memref<1x64xf32, #tpu.memory_space<vmem>>, %arg6: memref<64x32xf32, #tpu.memory_space<vmem>>, %arg7: memref<1x32xf32, #tpu.memory_space<vmem>>, %arg8: memref<1x32xf32, #tpu.memory_space<vmem>>, %arg9: memref<1x1xf32, #tpu.memory_space<vmem>>, %arg10: memref<8x1xf32, #tpu.memory_space<vmem>>) attributes {dimension_semantics = [#tpu.dimension_semantics<parallel>], iteration_bounds = array<i64: 1>, scalar_prefetch = 0 : i64, scratch_operands = 0 : i64, tpu.core_type = #tpu.core_type<tc>, window_params = [{transform_indices = @transform_0, window_bounds = array<i64: 8, 16>}, {pipeline_mode = #tpu.pipeline_mode<synchronous>, transform_indices = @transform_1, window_bounds = array<i64: 16, 128>}, {pipeline_mode = #tpu.pipeline_mode<synchronous>, transform_indices = @transform_2, window_bounds = array<i64: 1, 128>}, {pipeline_mode = #tpu.pipeline_mode<synchronous>, transform_indices = @transform_3, window_bounds = array<i64: 128, 64>}, {pipeline_mode = #tpu.pipeline_mode<synchronous>, transform_indices = @transform_4, window_bounds = array<i64: 1, 64>}, {pipeline_mode = #tpu.pipeline_mode<synchronous>, transform_indices = @transform_5, window_bounds = array<i64: 64, 32>}, {pipeline_mode = #tpu.pipeline_mode<synchronous>, transform_indices = @transform_6, window_bounds = array<i64: 1, 32>}, {pipeline_mode = #tpu.pipeline_mode<synchronous>, transform_indices = @transform_7, window_bounds = array<i64: 1, 32>}, {pipeline_mode = #tpu.pipeline_mode<synchronous>, transform_indices = @transform_8, window_bounds = array<i64: 1, 1>}, {transform_indices = @transform_9, window_bounds = array<i64: 8, 1>}]} {
    %c0 = arith.constant 0 : index
    %c0_0 = arith.constant 0 : index
    %0 = vector.load %arg1[%c0, %c0_0] : memref<8x16xf32, #tpu.memory_space<vmem>>, vector<8x16xf32>
    %c0_1 = arith.constant 0 : index
    %c0_2 = arith.constant 0 : index
    %1 = vector.load %arg2[%c0_1, %c0_2] : memref<16x128xf32, #tpu.memory_space<vmem>>, vector<16x128xf32>
    %cst = arith.constant dense<0.000000e+00> : vector<8x128xf32>
    %2 = tpu.matmul %0, %1, %cst {dimension_numbers = #tpu.dot_dimension_numbers<[1], [0], [0], [1], [0, 0, 1, 1], [], []>} : vector<8x16xf32>, vector<16x128xf32>, vector<8x128xf32> -> vector<8x128xf32>
    %c0_3 = arith.constant 0 : index
    %c0_4 = arith.constant 0 : index
    %3 = vector.load %arg3[%c0_3, %c0_4] : memref<1x128xf32, #tpu.memory_space<vmem>>, vector<1x128xf32>
    %4 = vector.broadcast %3 : vector<1x128xf32> to vector<8x128xf32>
    %5 = arith.addf %2, %4 : vector<8x128xf32>
    %cst_5 = arith.constant 0.000000e+00 : f32
    %6 = vector.broadcast %cst_5 : f32 to vector<8x128xf32>
    %7 = arith.maximumf %5, %6 : vector<8x128xf32>
    %c0_6 = arith.constant 0 : index
    %c0_7 = arith.constant 0 : index
    %8 = vector.load %arg4[%c0_6, %c0_7] : memref<128x64xf32, #tpu.memory_space<vmem>>, vector<128x64xf32>
    %cst_8 = arith.constant dense<0.000000e+00> : vector<8x64xf32>
    %9 = tpu.matmul %7, %8, %cst_8 {dimension_numbers = #tpu.dot_dimension_numbers<[1], [0], [0], [1], [0, 0, 1, 1], [], []>} : vector<8x128xf32>, vector<128x64xf32>, vector<8x64xf32> -> vector<8x64xf32>
    %c0_9 = arith.constant 0 : index
    %c0_10 = arith.constant 0 : index
    %10 = vector.load %arg5[%c0_9, %c0_10] : memref<1x64xf32, #tpu.memory_space<vmem>>, vector<1x64xf32>
    %11 = vector.broadcast %10 : vector<1x64xf32> to vector<8x64xf32>
    %12 = arith.addf %9, %11 : vector<8x64xf32>
    %cst_11 = arith.constant 0.000000e+00 : f32
    %13 = vector.broadcast %cst_11 : f32 to vector<8x64xf32>
    %14 = arith.maximumf %12, %13 : vector<8x64xf32>
    %c0_12 = arith.constant 0 : index
    %c0_13 = arith.constant 0 : index
    %15 = vector.load %arg6[%c0_12, %c0_13] : memref<64x32xf32, #tpu.memory_space<vmem>>, vector<64x32xf32>
    %cst_14 = arith.constant dense<0.000000e+00> : vector<8x32xf32>
    %16 = tpu.matmul %14, %15, %cst_14 {dimension_numbers = #tpu.dot_dimension_numbers<[1], [0], [0], [1], [0, 0, 1, 1], [], []>} : vector<8x64xf32>, vector<64x32xf32>, vector<8x32xf32> -> vector<8x32xf32>
    %c0_15 = arith.constant 0 : index
    %c0_16 = arith.constant 0 : index
    %17 = vector.load %arg7[%c0_15, %c0_16] : memref<1x32xf32, #tpu.memory_space<vmem>>, vector<1x32xf32>
    %18 = vector.broadcast %17 : vector<1x32xf32> to vector<8x32xf32>
    %19 = arith.addf %16, %18 : vector<8x32xf32>
    %cst_17 = arith.constant 0.000000e+00 : f32
    %20 = vector.broadcast %cst_17 : f32 to vector<8x32xf32>
    %21 = arith.maximumf %19, %20 : vector<8x32xf32>
    %c0_18 = arith.constant 0 : index
    %c0_19 = arith.constant 0 : index
    %22 = vector.load %arg8[%c0_18, %c0_19] : memref<1x32xf32, #tpu.memory_space<vmem>>, vector<1x32xf32>
    %23 = vector.broadcast %22 : vector<1x32xf32> to vector<8x32xf32>
    %24 = arith.mulf %21, %23 : vector<8x32xf32>
    %25 = vector.shape_cast %24 : vector<8x32xf32> to vector<8x1x32xf32>
    %cst_20 = arith.constant dense<0.000000e+00> : vector<8x1xf32>
    %26 = vector.multi_reduction <add>, %25, %cst_20 [2] : vector<8x1x32xf32> to vector<8x1xf32>
    %c0_21 = arith.constant 0 : index
    %c0_22 = arith.constant 0 : index
    %27 = vector.load %arg9[%c0_21, %c0_22] : memref<1x1xf32, #tpu.memory_space<vmem>>, vector<1x1xf32>
    %28 = vector.broadcast %27 : vector<1x1xf32> to vector<8x1xf32>
    %29 = arith.addf %26, %28 : vector<8x1xf32>
    %c0_23 = arith.constant 0 : index
    %c0_24 = arith.constant 0 : index
    %30 = vector.load %arg10[%c0_23, %c0_24] : memref<8x1xf32, #tpu.memory_space<vmem>>, vector<8x1xf32>
    tpu.vector_store %arg10[%c0_23, %c0_24], %29 {strides = array<i32>} : memref<8x1xf32, #tpu.memory_space<vmem>>, vector<8x1xf32>,
    return
  }
  func.func @transform_0(%arg0: i32) -> (i32, i32) {
    %c0_i32 = arith.constant 0 : i32
    %c0_i32_0 = arith.constant 0 : i32
    return %arg0, %c0_i32 : i32, i32
  }
  func.func @transform_1(%arg0: i32) -> (i32, i32) {
    %c0_i32 = arith.constant 0 : i32
    %c0_i32_0 = arith.constant 0 : i32
    %c0_i32_1 = arith.constant 0 : i32
    return %c0_i32, %c0_i32_0 : i32, i32
  }
  func.func @transform_2(%arg0: i32) -> (i32, i32) {
    %c0_i32 = arith.constant 0 : i32
    %c0_i32_0 = arith.constant 0 : i32
    %c0_i32_1 = arith.constant 0 : i32
    return %c0_i32, %c0_i32_0 : i32, i32
  }
  func.func @transform_3(%arg0: i32) -> (i32, i32) {
    %c0_i32 = arith.constant 0 : i32
    %c0_i32_0 = arith.constant 0 : i32
    %c0_i32_1 = arith.constant 0 : i32
    return %c0_i32, %c0_i32_0 : i32, i32
  }
  func.func @transform_4(%arg0: i32) -> (i32, i32) {
    %c0_i32 = arith.constant 0 : i32
    %c0_i32_0 = arith.constant 0 : i32
    %c0_i32_1 = arith.constant 0 : i32
    return %c0_i32, %c0_i32_0 : i32, i32
  }
  func.func @transform_5(%arg0: i32) -> (i32, i32) {
    %c0_i32 = arith.constant 0 : i32
    %c0_i32_0 = arith.constant 0 : i32
    %c0_i32_1 = arith.constant 0 : i32
    return %c0_i32, %c0_i32_0 : i32, i32
  }
  func.func @transform_6(%arg0: i32) -> (i32, i32) {
    %c0_i32 = arith.constant 0 : i32
    %c0_i32_0 = arith.constant 0 : i32
    %c0_i32_1 = arith.constant 0 : i32
    return %c0_i32, %c0_i32_0 : i32, i32
  }
  func.func @transform_7(%arg0: i32) -> (i32, i32) {
    %c0_i32 = arith.constant 0 : i32
    %c0_i32_0 = arith.constant 0 : i32
    %c0_i32_1 = arith.constant 0 : i32
    return %c0_i32, %c0_i32_0 : i32, i32
  }
  func.func @transform_8(%arg0: i32) -> (i32, i32) {
    %c0_i32 = arith.constant 0 : i32
    %c0_i32_0 = arith.constant 0 : i32
    %c0_i32_1 = arith.constant 0 : i32
    return %c0_i32, %c0_i32_0 : i32, i32
  }
  func.func @transform_9(%arg0: i32) -> (i32, i32) {
    %c0_i32 = arith.constant 0 : i32
    %c0_i32_0 = arith.constant 0 : i32
    return %arg0, %c0_i32 : i32, i32
  }
}

</mosaic_0001>

<llo_original>
// kernel: tpu_custom_call.1
$region0: #{tpu_custom_call.1}
  #allocation0 [shape = 'u32[]', space=smem, size = 0x4, offset = 0x4, fixed_abs, tag = 'smem constant byte address 0x4 - core index']
  #allocation1 [shape = 'u32[144,128]{1,0:T(1,128)}', space=vmem, size = 0x12000, scoped, tag = 'internal scratch']
  #allocation2 [shape = 'f32[1,1]{1,0:T(1,128)S(1)}', space=vmem, size = 0x200, scoped, tag = 'scoped memory for tpu_custom_call.1']
  %s0 = inlined_call_operand.vmem [shape: f32[8,16], index: 0, kind: input, shape index: {}]
  %s1 = inlined_call_operand.vmem [shape: f32[16,128], index: 1, kind: input, shape index: {}]
  %s2 = inlined_call_operand.vmem [shape: f32[1,128], index: 2, kind: input, shape index: {}]
  %s3 = inlined_call_operand.vmem [shape: f32[128,64], index: 3, kind: input, shape index: {}]
  %s4 = inlined_call_operand.vmem [shape: f32[1,64], index: 4, kind: input, shape index: {}]
  %s5 = inlined_call_operand.vmem [shape: f32[64,32], index: 5, kind: input, shape index: {}]
  %s6 = inlined_call_operand.vmem [shape: f32[1,32], index: 6, kind: input, shape index: {}]
  %s7 = inlined_call_operand.vmem [shape: f32[1,32], index: 7, kind: input, shape index: {}]
  %s8 = inlined_call_operand.<no memory space> [shape: f32[1,1], index: 8, kind: input, shape index: {}]
  %s9 = inlined_call_operand.vmem [shape: f32[8,1], index: 9, kind: output, shape index: {}]
  %s10 = sld [smem:[#allocation0]]
  $region46: #{tpu_custom_call.1} parent=0
    _
  %s12 = ssub.s32 1, %s10
  %s13 = scalar_select 0, %s12, %s10
  %v14 = vstv %s8
  %15 = vst [vmem:[#allocation2] sm:$0x1] %v14
  // Predicated region
  $region2: #{tpu_custom_call.1} parent=0 // pred_check
    _
  $region3: #{tpu_custom_call.1} parent=0 // pred_check_branch
    %17 = sbr.rel (0) target = $region5
  $region4: #{tpu_custom_call.1} parent=0 // pred_region
    _
  $region5: #{tpu_custom_call.1} parent=0 // pred_fallthru
    _
  // Predicated region
  $region6: #{tpu_custom_call.1} parent=0 // pred_check
    _
  $region7: #{tpu_custom_call.1} parent=0 // pred_check_branch
    %19 = sbr.rel (0) target = $region9
  $region8: #{tpu_custom_call.1} parent=0 // pred_region
    _
  $region9: #{tpu_custom_call.1} parent=0 // pred_fallthru
    _
  // Predicated region
  $region10: #{tpu_custom_call.1} parent=0 // pred_check
    _
  $region11: #{tpu_custom_call.1} parent=0 // pred_check_branch
    %21 = sbr.rel (0) target = $region13
  $region12: #{tpu_custom_call.1} parent=0 // pred_region
    _
  $region13: #{tpu_custom_call.1} parent=0 // pred_fallthru
    _
  // Predicated region
  $region14: #{tpu_custom_call.1} parent=0 // pred_check
    _
  $region15: #{tpu_custom_call.1} parent=0 // pred_check_branch
    %23 = sbr.rel (0) target = $region17
  $region16: #{tpu_custom_call.1} parent=0 // pred_region
    _
  $region17: #{tpu_custom_call.1} parent=0 // pred_fallthru
    _
  // Predicated region
  $region18: #{tpu_custom_call.1} parent=0 // pred_check
    _
  $region19: #{tpu_custom_call.1} parent=0 // pred_check_branch
    %25 = sbr.rel (0) target = $region21
  $region20: #{tpu_custom_call.1} parent=0 // pred_region
    _
  $region21: #{tpu_custom_call.1} parent=0 // pred_fallthru
    _
  // Predicated region
  $region22: #{tpu_custom_call.1} parent=0 // pred_check
    _
  $region23: #{tpu_custom_call.1} parent=0 // pred_check_branch
    %27 = sbr.rel (0) target = $region25
  $region24: #{tpu_custom_call.1} parent=0 // pred_region
    _
  $region25: #{tpu_custom_call.1} parent=0 // pred_fallthru
    _
  // Predicated region
  $region26: #{tpu_custom_call.1} parent=0 // pred_check
    _
  $region27: #{tpu_custom_call.1} parent=0 // pred_check_branch
    %29 = sbr.rel (0) target = $region29
  $region28: #{tpu_custom_call.1} parent=0 // pred_region
    _
  $region29: #{tpu_custom_call.1} parent=0 // pred_fallthru
    _
  // Predicated region
  $region30: #{tpu_custom_call.1} parent=0 // pred_check
    _
  $region31: #{tpu_custom_call.1} parent=0 // pred_check_branch
    %31 = sbr.rel (0) target = $region33
  $region32: #{tpu_custom_call.1} parent=0 // pred_region
    _
  $region33: #{tpu_custom_call.1} parent=0 // pred_fallthru
    _
  // Predicated region
  $region34: #{tpu_custom_call.1} parent=0 // pred_check
    _
  $region35: #{tpu_custom_call.1} parent=0 // pred_check_branch
    %33 = sbr.rel (0) target = $region37
  $region36: #{tpu_custom_call.1} parent=0 // pred_region
    _
  $region37: #{tpu_custom_call.1} parent=0 // pred_fallthru
    _
  %v34 = vld [vmem:[%s0] sm:$0xff]
  %v35 = vld [vmem:[%s1] sm:$0xff]
  %v36 = vld [vmem:[%s1 + $0x8] sm:$0xff]
  %v37 = vld [vmem:[%s2] sm:$0x1]
  %v39 = vlaneseq
  %v40 = vshrl.u32 %v39, 7
  %v41 = vsub.s32 0, %v40
  %v42 = vrot.slane %v37, %v41
  %vm44 = vcmask 130048
  %v46 = vsel %vm44, %v34, 0
  %48 = vmatprep.subr.mxu0 0.0
  %49 = vmatpush1.msra.mxu0 0.0
  %50 = vmatprep.subr.mxu0 0.0
  %51 = vmatpush1.msra.mxu0 0.0
  %52 = vmatprep.subr.mxu0 0.0
  %53 = vmatpush1.msra.mxu0 0.0
  %54 = vmatprep.subr.mxu0 0.0
  %55 = vmatpush1.msra.mxu0 0.0
  %56 = vmatprep.subr.mxu0 0.0
  %57 = vmatpush1.msra.mxu0 0.0
  %58 = vmatprep.subr.mxu0 0.0
  %59 = vmatpush1.msra.mxu0 0.0
  %60 = vmatprep.subr.mxu0 0.0
  %61 = vmatpush1.msra.mxu0 0.0
  %62 = vmatprep.subr.mxu0 0.0
  %63 = vmatpush1.msra.mxu0 0.0
  %64 = vmatprep.subr.mxu0 0.0
  %65 = vmatpush1.msra.mxu0 0.0
  %66 = vmatprep.subr.mxu0 0.0
  %67 = vmatpush1.msra.mxu0 0.0
  %68 = vmatprep.subr.mxu0 0.0
  %69 = vmatpush1.msra.mxu0 0.0
  %70 = vmatprep.subr.mxu0 0.0
  %71 = vmatpush1.msra.mxu0 0.0
  %72 = vmatprep.subr.mxu0 0.0
  %73 = vmatpush1.msra.mxu0 0.0
  %74 = vmatprep.subr.mxu0 0.0
  %75 = vmatpush1.msra.mxu0 0.0
  %76 = vmatprep.subr.mxu0 0.0
  %77 = vmatpush1.msra.mxu0 %v36
  %78 = vmatprep.subr.mxu0 0.0
  %79 = vmatpush1.msra.mxu0 %v35
  %80 = vmatprep.subr.mxu0 0.0
  %81 = vmatpush2.msra.mxu0 0.0
  %82 = vmatprep.subr.mxu0 0.0
  %83 = vmatpush2.msra.mxu0 0.0
  %84 = vmatprep.subr.mxu0 0.0
  %85 = vmatpush2.msra.mxu0 0.0
  %86 = vmatprep.subr.mxu0 0.0
  %87 = vmatpush2.msra.mxu0 0.0
  %88 = vmatprep.subr.mxu0 0.0
  %89 = vmatpush2.msra.mxu0 0.0
  %90 = vmatprep.subr.mxu0 0.0
  %91 = vmatpush2.msra.mxu0 0.0
  %92 = vmatprep.subr.mxu0 0.0
  %93 = vmatpush2.msra.mxu0 0.0
  %94 = vmatprep.subr.mxu0 0.0
  %95 = vmatpush2.msra.mxu0 0.0
  %96 = vmatprep.subr.mxu0 0.0
  %97 = vmatpush2.msra.mxu0 0.0
  %98 = vmatprep.subr.mxu0 0.0
  %99 = vmatpush2.msra.mxu0 0.0
  %100 = vmatprep.subr.mxu0 0.0
  %101 = vmatpush2.msra.mxu0 0.0
  %102 = vmatprep.subr.mxu0 0.0
  %103 = vmatpush2.msra.mxu0 0.0
  %104 = vmatprep.subr.mxu0 0.0
  %105 = vmatpush2.msra.mxu0 0.0
  %106 = vmatprep.subr.mxu0 0.0
  %107 = vmatpush2.msra.mxu0 0.0
  %108 = vmatprep.subr.mxu0 0.0
  %109 = vmatpush2.msra.mxu0 0.0
  %110 = vmatprep.subr.mxu0 0.0
  %111 = vmatpush2.msra.mxu0 0.0
  %112 = vmatprep.mubr.f32.mxu0 0.0
  %113 = vmatmul.mubr.f32.gmra.mxu0 %v46
  %v114 = vpop.f32.mrf.mxu0
  %v115 = vadd.f32 %v42, %v114
  %v116 = vpop.f32.mrf.mxu0
  %117 = vdwg.mxu0
  %v118 = vmax.f32 %v115, 0.0
  %v119 = vld [vmem:[%s3] sm:$0xff]
  %v120 = vld [vmem:[%s3 + $0x8] sm:$0xff]
  %v121 = vld [vmem:[%s3 + $0x10] sm:$0xff]
  %v122 = vld [vmem:[%s3 + $0x18] sm:$0xff]
  %v123 = vld [vmem:[%s3 + $0x20] sm:$0xff]
  %v124 = vld [vmem:[%s3 + $0x28] sm:$0xff]
  %v125 = vld [vmem:[%s3 + $0x30] sm:$0xff]
  %v126 = vld [vmem:[%s3 + $0x38] sm:$0xff]
  %v127 = vld [vmem:[%s3 + $0x40] sm:$0xff]
  %v128 = vld [vmem:[%s3 + $0x48] sm:$0xff]
  %v129 = vld [vmem:[%s3 + $0x50] sm:$0xff]
  %v130 = vld [vmem:[%s3 + $0x58] sm:$0xff]
  %v131 = vld [vmem:[%s3 + $0x60] sm:$0xff]
  %v132 = vld [vmem:[%s3 + $0x68] sm:$0xff]
  %v133 = vld [vmem:[%s3 + $0x70] sm:$0xff]
  %v134 = vld [vmem:[%s3 + $0x78] sm:$0xff]
  %v135 = vld [vmem:[%s4] sm:$0x1]
  %v137 = vlaneseq
  %v138 = vshrl.u32 %v137, 7
  %v139 = vsub.s32 0, %v138
  %v140 = vrot.slane %v135, %v139
  %142 = vmatprep.subr.mxu0 0.0
  %143 = vmatpush1.msra.mxu0 %v134
  %144 = vmatprep.subr.mxu0 0.0
  %145 = vmatpush1.msra.mxu0 %v133
  %146 = vmatprep.subr.mxu0 0.0
  %147 = vmatpush1.msra.mxu0 %v132
  %148 = vmatprep.subr.mxu0 0.0
  %149 = vmatpush1.msra.mxu0 %v131
  %150 = vmatprep.subr.mxu0 0.0
  %151 = vmatpush1.msra.mxu0 %v130
  %152 = vmatprep.subr.mxu0 0.0
  %153 = vmatpush1.msra.mxu0 %v129
  %154 = vmatprep.subr.mxu0 0.0
  %155 = vmatpush1.msra.mxu0 %v128
  %156 = vmatprep.subr.mxu0 0.0
  %157 = vmatpush1.msra.mxu0 %v127
  %158 = vmatprep.subr.mxu0 0.0
  %159 = vmatpush1.msra.mxu0 %v126
  %160 = vmatprep.subr.mxu0 0.0
  %161 = vmatpush1.msra.mxu0 %v125
  %162 = vmatprep.subr.mxu0 0.0
  %163 = vmatpush1.msra.mxu0 %v124
  %164 = vmatprep.subr.mxu0 0.0
  %165 = vmatpush1.msra.mxu0 %v123
  %166 = vmatprep.subr.mxu0 0.0
  %167 = vmatpush1.msra.mxu0 %v122
  %168 = vmatprep.subr.mxu0 0.0
  %169 = vmatpush1.msra.mxu0 %v121
  %170 = vmatprep.subr.mxu0 0.0
  %171 = vmatpush1.msra.mxu0 %v120
  %172 = vmatprep.subr.mxu0 0.0
  %173 = vmatpush1.msra.mxu0 %v119
  %174 = vmatprep.subr.mxu0 0.0
  %175 = vmatpush2.msra.mxu0 0.0
  %176 = vmatprep.subr.mxu0 0.0
  %177 = vmatpush2.msra.mxu0 0.0
  %178 = vmatprep.subr.mxu0 0.0
  %179 = vmatpush2.msra.mxu0 0.0
  %180 = vmatprep.subr.mxu0 0.0
  %181 = vmatpush2.msra.mxu0 0.0
  %182 = vmatprep.subr.mxu0 0.0
  %183 = vmatpush2.msra.mxu0 0.0
  %184 = vmatprep.subr.mxu0 0.0
  %185 = vmatpush2.msra.mxu0 0.0
  %186 = vmatprep.subr.mxu0 0.0
  %187 = vmatpush2.msra.mxu0 0.0
  %188 = vmatprep.subr.mxu0 0.0
  %189 = vmatpush2.msra.mxu0 0.0
  %190 = vmatprep.subr.mxu0 0.0
  %191 = vmatpush2.msra.mxu0 0.0
  %192 = vmatprep.subr.mxu0 0.0
  %193 = vmatpush2.msra.mxu0 0.0
  %194 = vmatprep.subr.mxu0 0.0
  %195 = vmatpush2.msra.mxu0 0.0
  %196 = vmatprep.subr.mxu0 0.0
  %197 = vmatpush2.msra.mxu0 0.0
  %198 = vmatprep.subr.mxu0 0.0
  %199 = vmatpush2.msra.mxu0 0.0
  %200 = vmatprep.subr.mxu0 0.0
  %201 = vmatpush2.msra.mxu0 0.0
  %202 = vmatprep.subr.mxu0 0.0
  %203 = vmatpush2.msra.mxu0 0.0
  %204 = vmatprep.subr.mxu0 0.0
  %205 = vmatpush2.msra.mxu0 0.0
  %206 = vmatprep.mubr.f32.mxu0 0.0
  %207 = vmatmul.mubr.f32.gmra.mxu0 %v118
  %v208 = vpop.f32.mrf.mxu0
  %v209 = vadd.f32 %v140, %v208
  %v210 = vpop.f32.mrf.mxu0
  %211 = vdwg.mxu0
  %v212 = vmax.f32 %v209, 0.0
  %v213 = vld [vmem:[%s5] sm:$0xff]
  %v214 = vld [vmem:[%s5 + $0x8] sm:$0xff]
  %v215 = vld [vmem:[%s5 + $0x10] sm:$0xff]
  %v216 = vld [vmem:[%s5 + $0x18] sm:$0xff]
  %v217 = vld [vmem:[%s5 + $0x20] sm:$0xff]
  %v218 = vld [vmem:[%s5 + $0x28] sm:$0xff]
  %v219 = vld [vmem:[%s5 + $0x30] sm:$0xff]
  %v220 = vld [vmem:[%s5 + $0x38] sm:$0xff]
  %v221 = vld [vmem:[%s6] sm:$0x1]
  %v223 = vlaneseq
  %v224 = vshrl.u32 %v223, 7
  %v225 = vsub.s32 0, %v224
  %v226 = vrot.slane %v221, %v225
  %vm228 = vcmask 523264
  %v230 = vsel %vm228, %v212, 0
  %232 = vmatprep.subr.mxu0 0.0
  %233 = vmatpush1.msra.mxu0 0.0
  %234 = vmatprep.subr.mxu0 0.0
  %235 = vmatpush1.msra.mxu0 0.0
  %236 = vmatprep.subr.mxu0 0.0
  %237 = vmatpush1.msra.mxu0 0.0
  %238 = vmatprep.subr.mxu0 0.0
  %239 = vmatpush1.msra.mxu0 0.0
  %240 = vmatprep.subr.mxu0 0.0
  %241 = vmatpush1.msra.mxu0 0.0
  %242 = vmatprep.subr.mxu0 0.0
  %243 = vmatpush1.msra.mxu0 0.0
  %244 = vmatprep.subr.mxu0 0.0
  %245 = vmatpush1.msra.mxu0 0.0
  %246 = vmatprep.subr.mxu0 0.0
  %247 = vmatpush1.msra.mxu0 0.0
  %248 = vmatprep.subr.mxu0 0.0
  %249 = vmatpush1.msra.mxu0 %v220
  %250 = vmatprep.subr.mxu0 0.0
  %251 = vmatpush1.msra.mxu0 %v219
  %252 = vmatprep.subr.mxu0 0.0
  %253 = vmatpush1.msra.mxu0 %v218
  %254 = vmatprep.subr.mxu0 0.0
  %255 = vmatpush1.msra.mxu0 %v217
  %256 = vmatprep.subr.mxu0 0.0
  %257 = vmatpush1.msra.mxu0 %v216
  %258 = vmatprep.subr.mxu0 0.0
  %259 = vmatpush1.msra.mxu0 %v215
  %260 = vmatprep.subr.mxu0 0.0
  %261 = vmatpush1.msra.mxu0 %v214
  %262 = vmatprep.subr.mxu0 0.0
  %263 = vmatpush1.msra.mxu0 %v213
  %264 = vmatprep.subr.mxu0 0.0
  %265 = vmatpush2.msra.mxu0 0.0
  %266 = vmatprep.subr.mxu0 0.0
  %267 = vmatpush2.msra.mxu0 0.0
  %268 = vmatprep.subr.mxu0 0.0
  %269 = vmatpush2.msra.mxu0 0.0
  %270 = vmatprep.subr.mxu0 0.0
  %271 = vmatpush2.msra.mxu0 0.0
  %272 = vmatprep.subr.mxu0 0.0
  %273 = vmatpush2.msra.mxu0 0.0
  %274 = vmatprep.subr.mxu0 0.0
  %275 = vmatpush2.msra.mxu0 0.0
  %276 = vmatprep.subr.mxu0 0.0
  %277 = vmatpush2.msra.mxu0 0.0
  %278 = vmatprep.subr.mxu0 0.0
  %279 = vmatpush2.msra.mxu0 0.0
  %280 = vmatprep.subr.mxu0 0.0
  %281 = vmatpush2.msra.mxu0 0.0
  %282 = vmatprep.subr.mxu0 0.0
  %283 = vmatpush2.msra.mxu0 0.0
  %284 = vmatprep.subr.mxu0 0.0
  %285 = vmatpush2.msra.mxu0 0.0
  %286 = vmatprep.subr.mxu0 0.0
  %287 = vmatpush2.msra.mxu0 0.0
  %288 = vmatprep.subr.mxu0 0.0
  %289 = vmatpush2.msra.mxu0 0.0
  %290 = vmatprep.subr.mxu0 0.0
  %291 = vmatpush2.msra.mxu0 0.0
  %292 = vmatprep.subr.mxu0 0.0
  %293 = vmatpush2.msra.mxu0 0.0
  %294 = vmatprep.subr.mxu0 0.0
  %295 = vmatpush2.msra.mxu0 0.0
  %296 = vmatprep.mubr.f32.mxu0 0.0
  %297 = vmatmul.mubr.f32.gmra.mxu0 %v230
  %v298 = vpop.f32.mrf.mxu0
  %v299 = vadd.f32 %v226, %v298
  %v300 = vpop.f32.mrf.mxu0
  %301 = vdwg.mxu0
  %v302 = vmax.f32 %v299, 0.0
  %v303 = vld [vmem:[%s7] sm:$0x1]
  %v305 = vlaneseq
  %v306 = vshrl.u32 %v305, 7
  %v307 = vsub.s32 0, %v306
  %v308 = vrot.slane %v303, %v307
  %v310 = vmul.f32 %v302, %v308
  %v312 = vcombine.high %v310, %v310
  %v314 = vunpack.c.l.s4 1966171168
  %v315 = vunpack.c.0.s8 %v314
  %v316 = vlaneseq
  %v317 = vshrl.u32 %v316, 7
  %v318 = vsub.s32 %v315, %v317
  %v319 = vrot.slane %v310, %v318
  %v321 = vunpack.c.l.s4 1966171168
  %v322 = vunpack.c.0.s8 %v321
  %v323 = vlaneseq
  %v324 = vshrl.u32 %v323, 7
  %v325 = vsub.s32 %v322, %v324
  %v326 = vrot.slane %v312, %v325
  %v327 = vcombine.high %v319, %v319
  %v328 = vcombine.high %v326, %v326
  %v330 = vunpack.c.l.s4 1966171168
  %v331 = vunpack.c.0.s8 %v330
  %v332 = vlaneseq
  %v333 = vshrl.u32 %v332, 7
  %v334 = vsub.s32 %v331, %v333
  %v335 = vrot.slane %v319, %v334
  %v337 = vunpack.c.l.s4 1966171168
  %v338 = vunpack.c.0.s8 %v337
  %v339 = vlaneseq
  %v340 = vshrl.u32 %v339, 7
  %v341 = vsub.s32 %v338, %v340
  %v342 = vrot.slane %v326, %v341
  %v344 = vunpack.c.l.s4 1966171168
  %v345 = vunpack.c.0.s8 %v344
  %v346 = vlaneseq
  %v347 = vshrl.u32 %v346, 7
  %v348 = vsub.s32 %v345, %v347
  %v349 = vrot.slane %v327, %v348
  %v351 = vunpack.c.l.s4 1966171168
  %v352 = vunpack.c.0.s8 %v351
  %v353 = vlaneseq
  %v354 = vshrl.u32 %v353, 7
  %v355 = vsub.s32 %v352, %v354
  %v356 = vrot.slane %v328, %v355
  %v357 = vcombine.high %v335, %v335
  %v358 = vcombine.high %v342, %v342
  %v359 = vcombine.high %v349, %v349
  %v360 = vcombine.high %v356, %v356
  %vm369 = vcmask 253952
  %v370 = vsel %vm369, %v335, 0.0
  %371 = vadd.xlane.f32.xlu0 %v370
  %v372 = vpop.xlane.xlu0 %371
  %v373 = vsel %vm369, %v349, 0.0
  %374 = vadd.xlane.f32.xlu0 %v373
  %v375 = vpop.xlane.xlu0 %374
  %v376 = vsel %vm369, %v357, 0.0
  %377 = vadd.xlane.f32.xlu0 %v376
  %v378 = vpop.xlane.xlu0 %377
  %v379 = vsel %vm369, %v359, 0.0
  %380 = vadd.xlane.f32.xlu0 %v379
  %v381 = vpop.xlane.xlu0 %380
  %v382 = vsel %vm369, %v342, 0.0
  %383 = vadd.xlane.f32.xlu0 %v382
  %v384 = vpop.xlane.xlu0 %383
  %v385 = vsel %vm369, %v356, 0.0
  %386 = vadd.xlane.f32.xlu0 %v385
  %v387 = vpop.xlane.xlu0 %386
  %v388 = vsel %vm369, %v358, 0.0
  %389 = vadd.xlane.f32.xlu0 %v388
  %v390 = vpop.xlane.xlu0 %389
  %v391 = vsel %vm369, %v360, 0.0
  %392 = vadd.xlane.f32.xlu0 %v391
  %v393 = vpop.xlane.xlu0 %392
  %v394 = vld [vmem:[#allocation2] sm:$0x1]
  %v396 = vlaneseq
  %v397 = vshrl.u32 %v396, 7
  %v398 = vsub.s32 0, %v397
  %v399 = vrot.slane %v394, %v398
  %401 = vbcast.lane.b32.xlu0 %v399, 256
  %v402 = vpop.permute.xlu0 %401
  %v404 = vadd.f32 %v372, %v402
  %v405 = vadd.f32 %v375, %v402
  %v406 = vadd.f32 %v378, %v402
  %v407 = vadd.f32 %v381, %v402
  %v408 = vadd.f32 %v384, %v402
  %v409 = vadd.f32 %v387, %v402
  %v410 = vadd.f32 %v390, %v402
  %v411 = vadd.f32 %v393, %v402
  %v420 = vrot.slane %v405, 7
  %vm421 = vcmask 1041409
  %v422 = vsel %vm421, %v420, %v404
  %v423 = vrot.slane %v406, 6
  %vm424 = vcmask 1042434
  %v425 = vsel %vm424, %v423, %v422
  %v426 = vrot.slane %v407, 5
  %vm427 = vcmask 1043459
  %v428 = vsel %vm427, %v426, %v425
  %v429 = vrot.slane %v408, 4
  %vm430 = vcmask 1044484
  %v431 = vsel %vm430, %v429, %v428
  %v432 = vrot.slane %v409, 3
  %vm433 = vcmask 1045509
  %v434 = vsel %vm433, %v432, %v431
  %v435 = vrot.slane %v410, 2
  %vm436 = vcmask 1046534
  %v437 = vsel %vm436, %v435, %v434
  %v438 = vrot.slane %v411, 1
  %vm439 = vcmask 1047559
  %v440 = vsel %vm439, %v438, %v437
  %vm442 = vcmask 7168
  %443 = vst.msk [vmem:[%s9] sm:$0xff] %vm442, %v440
  // Predicated region
  $region38: #{tpu_custom_call.1} parent=0 // pred_check
    _
  $region39: #{tpu_custom_call.1} parent=0 // pred_check_branch
    %445 = sbr.rel (0) target = $region41
  $region40: #{tpu_custom_call.1} parent=0 // pred_region
    _
  $region41: #{tpu_custom_call.1} parent=0 // pred_fallthru
    _
  // Predicated region
  $region42: #{tpu_custom_call.1} parent=0 // pred_check
    _
  $region43: #{tpu_custom_call.1} parent=0 // pred_check_branch
    %447 = sbr.rel (0) target = $region45
  $region44: #{tpu_custom_call.1} parent=0 // pred_region
    _
  $region45: #{tpu_custom_call.1} parent=0 // pred_fallthru
    _

</llo_original>
